<compile_context>
chip_gen: v5e
topology: v5e:2x2
jax: 0.10.0
libtpu: 0.0.40
codegen_flags: <defaults>
</compile_context>

<pallas_src>
import jax
import jax.numpy as jnp
from jax.experimental import pallas as pl
from jax.experimental.pallas import tpu as pltpu

STATE_SIZE = 37
ACTION_SIZE = 4
HIDDEN = [32, 64, 128, 256]
DROP_P = 0.3  # TODO(synk): dropout is identity here (eval mode); training-mode
              # masking/scaling would need pltpu.prng_seed + prng_random_bits.

DEFAULT_BLOCK_B = 2048   # batch tile; ~10 MiB peak VMEM/step -> safe on v5e/v6e/v7x.
                         # Sweep 2048-4096 on v6e/v7x for a few-% extra.
SMALL_BATCH_MAX = 256    # below this, pallas_call launch overhead dominates.
OUT_PAD = 128            # lane-dense output width (multiple of 128 lanes).


def _round_up(n, m):
    return ((n + m - 1) // m) * m


def _tpu_cores_per_chip():
    """2 TensorCores per chip on v7x; 1 on v5e/v6e (v4 megacore handled by XLA)."""
    try:
        kind = jax.devices()[0].device_kind.lower()
    except Exception:
        return 1
    return 2 if "v7" in kind else 1


def qnetwork_kernel(x_ref,
                    w1_ref, b1_ref,
                    w2_ref, b2_ref,
                    w3_ref, b3_ref,
                    w4_ref, b4_ref,
                    wo_ref, bo_ref,
                    out_ref):
    """One batch tile of the fused MLP forward.

    Inputs and weights are bf16; every matmul accumulates in f32 on the MXU
    (preferred_element_type). Bias add / ReLU stay f32 (v5e has no bf16 VALU);
    activations are recast to bf16 between layers for the next MXU op.
    """

    def dense(h_bf16, w_ref, b_ref):
        return (jnp.dot(h_bf16, w_ref[...],
                        preferred_element_type=jnp.float32)
                + b_ref[...])

    h = x_ref[...]                                                     # bf16 [tb, 37]
    h = jnp.maximum(dense(h, w1_ref, b1_ref), 0.0).astype(jnp.bfloat16)
    h = jnp.maximum(dense(h, w2_ref, b2_ref), 0.0).astype(jnp.bfloat16)
    h = jnp.maximum(dense(h, w3_ref, b3_ref), 0.0).astype(jnp.bfloat16)
    h = jnp.maximum(dense(h, w4_ref, b4_ref), 0.0).astype(jnp.bfloat16)
    # Dropout (eval mode) == identity.
    out_ref[...] = dense(h, wo_ref, bo_ref)                            # f32 [tb, 128]


def qnetwork_forward(x, params, *, block_b=DEFAULT_BLOCK_B,
                     small_batch_fast_path=True):
    """x: [B, STATE_SIZE]. params: list of (W_bf16[in,out], b_f32[1,out])."""
    params = list(params)
    B = x.shape[0]
    n_out = params[-1][0].shape[1]

    # Tiny inference batches (typical DQN action selection): the whole forward
    # is < 1 us of compute, so skip the pallas_call launch entirely.
    if small_batch_fast_path and B <= SMALL_BATCH_MAX:
        return reference_forward(x, params)

    # bf16 input halves the per-tile input DMA and removes an in-kernel cast.
    x = x.astype(jnp.bfloat16)

    # Tail-padding policy: choose the number of tiles first, then the smallest
    # 16-row-aligned tile that covers B. Padding is bounded by <16 rows/tile
    # (16, not 8, so bf16 blocks align with the (16,128) packed tiling).
    num_cores = _tpu_cores_per_chip()
    n_tiles = -(-B // block_b)
    if num_cores > 1 and B >= 32 * num_cores:
        n_tiles = _round_up(n_tiles, num_cores)   # keep both v7x TCs busy
    tb = _round_up(-(-B // n_tiles), 16)
    B_pad = tb * n_tiles
    if B_pad != B:
        x = jnp.pad(x, ((0, B_pad - B), (0, 0)))

    # Lane-dense output: zero-pad the last layer to OUT_PAD columns so stores
    # are unmasked full-lane vst and the writeback DMA is wide.
    wo, bo = params[-1]
    if wo.shape[1] != OUT_PAD:
        wo = jnp.pad(wo, ((0, 0), (0, OUT_PAD - wo.shape[1])))
        bo = jnp.pad(bo, ((0, 0), (0, OUT_PAD - bo.shape[1])))
    padded_params = params[:-1] + [(wo, bo)]

    flat = []
    weight_specs = []
    for w, b in padded_params:
        flat.extend([w, b])
        # Full-array blocks with a constant index_map -> weights/biases stay
        # resident in VMEM across all grid steps (no re-DMA per tile).
        weight_specs.append(pl.BlockSpec(w.shape, lambda i: (0, 0)))
        weight_specs.append(pl.BlockSpec(b.shape, lambda i: (0, 0)))

    # v7x: CORE_PARALLEL shards the batch-tile axis across the 2 TensorCores
    # (plain "parallel" does not change codegen); other chips keep "parallel".
    dim_sem = (pltpu.CORE_PARALLEL,) if num_cores > 1 else ("parallel",)

    out = pl.pallas_call(
        qnetwork_kernel,
        out_shape=jax.ShapeDtypeStruct((B_pad, OUT_PAD), jnp.float32),
        grid=(n_tiles,),
        in_specs=[pl.BlockSpec((tb, STATE_SIZE), lambda i: (i, 0))] + weight_specs,
        out_specs=pl.BlockSpec((tb, OUT_PAD), lambda i: (i, 0)),
        compiler_params=pltpu.CompilerParams(
            dimension_semantics=dim_sem,
            vmem_limit_bytes=48 * 1024 * 1024),
    )(x, *flat)

    return out[:B, :n_out]


def init_params(key):
    """Deterministic init matching the PyTorch layer shapes.

    PyTorch Linear stores W as [out, in]; we init that way, then transpose to
    [in, out] and cast to bf16 for the kernel. Biases stay f32 as [1, out].
    """
    sizes = [STATE_SIZE] + HIDDEN + [ACTION_SIZE]
    params = []
    for fan_in, fan_out in zip(sizes[:-1], sizes[1:]):
        key, kw, kb = jax.random.split(key, 3)
        bound = 1.0 / jnp.sqrt(fan_in)
        w = jax.random.uniform(kw, (fan_out, fan_in), jnp.float32, -bound, bound)
        b = jax.random.uniform(kb, (fan_out,), jnp.float32, -bound, bound)
        params.append((w.T.astype(jnp.bfloat16),                        # [in, out] bf16
                       b.reshape(1, fan_out).astype(jnp.float32)))      # [1, out] f32
    return params


def reference_forward(x, params):
    """Pure-JAX reference with the same bf16-input / f32-accumulate numerics."""
    h = x.astype(jnp.bfloat16)
    for w, b in params[:-1]:
        a = jnp.dot(h, w, preferred_element_type=jnp.float32) + b
        h = jnp.maximum(a, 0.0).astype(jnp.bfloat16)
    w, b = params[-1]
    return jnp.dot(h, w, preferred_element_type=jnp.float32) + b


if __name__ == "__main__":
    key = jax.random.PRNGKey(0)
    key, kx = jax.random.split(key)
    params = init_params(key)

    # Small batch, forced through the Pallas kernel (single-tile path).
    B = 8
    x = jax.random.normal(kx, (B, STATE_SIZE), jnp.float32)
    q_vals = jax.block_until_ready(
        qnetwork_forward(x, params, small_batch_fast_path=False))
    ref = reference_forward(x, params)
    assert q_vals.shape == (B, ACTION_SIZE)
    assert jnp.allclose(q_vals, ref, atol=1e-3, rtol=1e-3)

    # Ragged batch (row-padding path) through the Pallas kernel.
    B2 = 5
    x2 = jax.random.normal(jax.random.PRNGKey(1), (B2, STATE_SIZE), jnp.float32)
    q2 = jax.block_until_ready(
        qnetwork_forward(x2, params, small_batch_fast_path=False))
    ref2 = reference_forward(x2, params)
    assert q2.shape == (B2, ACTION_SIZE)
    assert jnp.allclose(q2, ref2, atol=1e-3, rtol=1e-3)

    # Multi-tile grid path (n_tiles > 1) with a batch that is not a tile multiple.
    B3 = 600
    x3 = jax.random.normal(jax.random.PRNGKey(2), (B3, STATE_SIZE), jnp.float32)
    q3 = jax.block_until_ready(qnetwork_forward(x3, params, block_b=256))
    ref3 = reference_forward(x3, params)
    assert q3.shape == (B3, ACTION_SIZE)
    assert jnp.allclose(q3, ref3, atol=1e-3, rtol=1e-3)

    # Small-batch fast path (pure XLA, avoids pallas_call launch overhead).
    q4 = jax.block_until_ready(qnetwork_forward(x, params))
    assert q4.shape == (B, ACTION_SIZE)
    assert jnp.allclose(q4, ref, atol=1e-3, rtol=1e-3)

    print("KERNEL_OK")
</pallas_src>

<mosaic_0001>
module attributes {stable_mosaic.version = 11 : i64} {
  func.func @qnetwork_kernel(%arg0: i32, %arg1: memref<16x37xbf16, #tpu.memory_space<vmem>>, %arg2: memref<37x32xbf16, #tpu.memory_space<vmem>>, %arg3: memref<1x32xf32, #tpu.memory_space<vmem>>, %arg4: memref<32x64xbf16, #tpu.memory_space<vmem>>, %arg5: memref<1x64xf32, #tpu.memory_space<vmem>>, %arg6: memref<64x128xbf16, #tpu.memory_space<vmem>>, %arg7: memref<1x128xf32, #tpu.memory_space<vmem>>, %arg8: memref<128x256xbf16, #tpu.memory_space<vmem>>, %arg9: memref<1x256xf32, #tpu.memory_space<vmem>>, %arg10: memref<256x128xbf16, #tpu.memory_space<vmem>>, %arg11: memref<1x128xf32, #tpu.memory_space<vmem>>, %arg12: memref<16x128xf32, #tpu.memory_space<vmem>>) attributes {dimension_semantics = [#tpu.dimension_semantics<parallel>], iteration_bounds = array<i64: 1>, scalar_prefetch = 0 : i64, scratch_operands = 0 : i64, tpu.core_type = #tpu.core_type<tc>, window_params = [{transform_indices = @transform_0, window_bounds = array<i64: 16, 37>}, {pipeline_mode = #tpu.pipeline_mode<synchronous>, transform_indices = @transform_1, window_bounds = array<i64: 37, 32>}, {pipeline_mode = #tpu.pipeline_mode<synchronous>, transform_indices = @transform_2, window_bounds = array<i64: 1, 32>}, {pipeline_mode = #tpu.pipeline_mode<synchronous>, transform_indices = @transform_3, window_bounds = array<i64: 32, 64>}, {pipeline_mode = #tpu.pipeline_mode<synchronous>, transform_indices = @transform_4, window_bounds = array<i64: 1, 64>}, {pipeline_mode = #tpu.pipeline_mode<synchronous>, transform_indices = @transform_5, window_bounds = array<i64: 64, 128>}, {pipeline_mode = #tpu.pipeline_mode<synchronous>, transform_indices = @transform_6, window_bounds = array<i64: 1, 128>}, {pipeline_mode = #tpu.pipeline_mode<synchronous>, transform_indices = @transform_7, window_bounds = array<i64: 128, 256>}, {pipeline_mode = #tpu.pipeline_mode<synchronous>, transform_indices = @transform_8, window_bounds = array<i64: 1, 256>}, {pipeline_mode = #tpu.pipeline_mode<synchronous>, transform_indices = @transform_9, window_bounds = array<i64: 256, 128>}, {pipeline_mode = #tpu.pipeline_mode<synchronous>, transform_indices = @transform_10, window_bounds = array<i64: 1, 128>}, {transform_indices = @transform_11, window_bounds = array<i64: 16, 128>}]} {
    %c0 = arith.constant 0 : index
    %c0_0 = arith.constant 0 : index
    %0 = vector.load %arg1[%c0, %c0_0] : memref<16x37xbf16, #tpu.memory_space<vmem>>, vector<16x37xbf16>
    %c0_1 = arith.constant 0 : index
    %c0_2 = arith.constant 0 : index
    %1 = vector.load %arg2[%c0_1, %c0_2] : memref<37x32xbf16, #tpu.memory_space<vmem>>, vector<37x32xbf16>
    %cst = arith.constant dense<0.000000e+00> : vector<16x32xf32>
    %2 = tpu.matmul %0, %1, %cst {dimension_numbers = #tpu.dot_dimension_numbers<[1], [0], [0], [1], [0, 0, 1, 1], [], []>} : vector<16x37xbf16>, vector<37x32xbf16>, vector<16x32xf32> -> vector<16x32xf32>
    %c0_3 = arith.constant 0 : index
    %c0_4 = arith.constant 0 : index
    %3 = vector.load %arg3[%c0_3, %c0_4] : memref<1x32xf32, #tpu.memory_space<vmem>>, vector<1x32xf32>
    %4 = vector.broadcast %3 : vector<1x32xf32> to vector<16x32xf32>
    %5 = arith.addf %2, %4 : vector<16x32xf32>
    %cst_5 = arith.constant 0.000000e+00 : f32
    %6 = vector.broadcast %cst_5 : f32 to vector<16x32xf32>
    %7 = arith.maximumf %5, %6 : vector<16x32xf32>
    %8 = arith.truncf %7 : vector<16x32xf32> to vector<16x32xbf16>
    %c0_6 = arith.constant 0 : index
    %c0_7 = arith.constant 0 : index
    %9 = vector.load %arg4[%c0_6, %c0_7] : memref<32x64xbf16, #tpu.memory_space<vmem>>, vector<32x64xbf16>
    %cst_8 = arith.constant dense<0.000000e+00> : vector<16x64xf32>
    %10 = tpu.matmul %8, %9, %cst_8 {dimension_numbers = #tpu.dot_dimension_numbers<[1], [0], [0], [1], [0, 0, 1, 1], [], []>} : vector<16x32xbf16>, vector<32x64xbf16>, vector<16x64xf32> -> vector<16x64xf32>
    %c0_9 = arith.constant 0 : index
    %c0_10 = arith.constant 0 : index
    %11 = vector.load %arg5[%c0_9, %c0_10] : memref<1x64xf32, #tpu.memory_space<vmem>>, vector<1x64xf32>
    %12 = vector.broadcast %11 : vector<1x64xf32> to vector<16x64xf32>
    %13 = arith.addf %10, %12 : vector<16x64xf32>
    %cst_11 = arith.constant 0.000000e+00 : f32
    %14 = vector.broadcast %cst_11 : f32 to vector<16x64xf32>
    %15 = arith.maximumf %13, %14 : vector<16x64xf32>
    %16 = arith.truncf %15 : vector<16x64xf32> to vector<16x64xbf16>
    %c0_12 = arith.constant 0 : index
    %c0_13 = arith.constant 0 : index
    %17 = vector.load %arg6[%c0_12, %c0_13] : memref<64x128xbf16, #tpu.memory_space<vmem>>, vector<64x128xbf16>
    %cst_14 = arith.constant dense<0.000000e+00> : vector<16x128xf32>
    %18 = tpu.matmul %16, %17, %cst_14 {dimension_numbers = #tpu.dot_dimension_numbers<[1], [0], [0], [1], [0, 0, 1, 1], [], []>} : vector<16x64xbf16>, vector<64x128xbf16>, vector<16x128xf32> -> vector<16x128xf32>
    %c0_15 = arith.constant 0 : index
    %c0_16 = arith.constant 0 : index
    %19 = vector.load %arg7[%c0_15, %c0_16] : memref<1x128xf32, #tpu.memory_space<vmem>>, vector<1x128xf32>
    %20 = vector.broadcast %19 : vector<1x128xf32> to vector<16x128xf32>
    %21 = arith.addf %18, %20 : vector<16x128xf32>
    %cst_17 = arith.constant 0.000000e+00 : f32
    %22 = vector.broadcast %cst_17 : f32 to vector<16x128xf32>
    %23 = arith.maximumf %21, %22 : vector<16x128xf32>
    %24 = arith.truncf %23 : vector<16x128xf32> to vector<16x128xbf16>
    %c0_18 = arith.constant 0 : index
    %c0_19 = arith.constant 0 : index
    %25 = vector.load %arg8[%c0_18, %c0_19] : memref<128x256xbf16, #tpu.memory_space<vmem>>, vector<128x256xbf16>
    %cst_20 = arith.constant dense<0.000000e+00> : vector<16x256xf32>
    %26 = tpu.matmul %24, %25, %cst_20 {dimension_numbers = #tpu.dot_dimension_numbers<[1], [0], [0], [1], [0, 0, 1, 1], [], []>} : vector<16x128xbf16>, vector<128x256xbf16>, vector<16x256xf32> -> vector<16x256xf32>
    %c0_21 = arith.constant 0 : index
    %c0_22 = arith.constant 0 : index
    %27 = vector.load %arg9[%c0_21, %c0_22] : memref<1x256xf32, #tpu.memory_space<vmem>>, vector<1x256xf32>
    %28 = vector.broadcast %27 : vector<1x256xf32> to vector<16x256xf32>
    %29 = arith.addf %26, %28 : vector<16x256xf32>
    %cst_23 = arith.constant 0.000000e+00 : f32
    %30 = vector.broadcast %cst_23 : f32 to vector<16x256xf32>
    %31 = arith.maximumf %29, %30 : vector<16x256xf32>
    %32 = arith.truncf %31 : vector<16x256xf32> to vector<16x256xbf16>
    %c0_24 = arith.constant 0 : index
    %c0_25 = arith.constant 0 : index
    %33 = vector.load %arg10[%c0_24, %c0_25] : memref<256x128xbf16, #tpu.memory_space<vmem>>, vector<256x128xbf16>
    %cst_26 = arith.constant dense<0.000000e+00> : vector<16x128xf32>
    %34 = tpu.matmul %32, %33, %cst_26 {dimension_numbers = #tpu.dot_dimension_numbers<[1], [0], [0], [1], [0, 0, 1, 1], [], []>} : vector<16x256xbf16>, vector<256x128xbf16>, vector<16x128xf32> -> vector<16x128xf32>
    %c0_27 = arith.constant 0 : index
    %c0_28 = arith.constant 0 : index
    %35 = vector.load %arg11[%c0_27, %c0_28] : memref<1x128xf32, #tpu.memory_space<vmem>>, vector<1x128xf32>
    %36 = vector.broadcast %35 : vector<1x128xf32> to vector<16x128xf32>
    %37 = arith.addf %34, %36 : vector<16x128xf32>
    %c0_29 = arith.constant 0 : index
    %c0_30 = arith.constant 0 : index
    %38 = vector.load %arg12[%c0_29, %c0_30] : memref<16x128xf32, #tpu.memory_space<vmem>>, vector<16x128xf32>
    tpu.vector_store %arg12[%c0_29, %c0_30], %37 {strides = array<i32>} : memref<16x128xf32, #tpu.memory_space<vmem>>, vector<16x128xf32>,
    return
  }
  func.func @transform_0(%arg0: i32) -> (i32, i32) {
    %c0_i32 = arith.constant 0 : i32
    %c0_i32_0 = arith.constant 0 : i32
    return %arg0, %c0_i32 : i32, i32
  }
  func.func @transform_1(%arg0: i32) -> (i32, i32) {
    %c0_i32 = arith.constant 0 : i32
    %c0_i32_0 = arith.constant 0 : i32
    %c0_i32_1 = arith.constant 0 : i32
    return %c0_i32, %c0_i32_0 : i32, i32
  }
  func.func @transform_2(%arg0: i32) -> (i32, i32) {
    %c0_i32 = arith.constant 0 : i32
    %c0_i32_0 = arith.constant 0 : i32
    %c0_i32_1 = arith.constant 0 : i32
    return %c0_i32, %c0_i32_0 : i32, i32
  }
  func.func @transform_3(%arg0: i32) -> (i32, i32) {
    %c0_i32 = arith.constant 0 : i32
    %c0_i32_0 = arith.constant 0 : i32
    %c0_i32_1 = arith.constant 0 : i32
    return %c0_i32, %c0_i32_0 : i32, i32
  }
  func.func @transform_4(%arg0: i32) -> (i32, i32) {
    %c0_i32 = arith.constant 0 : i32
    %c0_i32_0 = arith.constant 0 : i32
    %c0_i32_1 = arith.constant 0 : i32
    return %c0_i32, %c0_i32_0 : i32, i32
  }
  func.func @transform_5(%arg0: i32) -> (i32, i32) {
    %c0_i32 = arith.constant 0 : i32
    %c0_i32_0 = arith.constant 0 : i32
    %c0_i32_1 = arith.constant 0 : i32
    return %c0_i32, %c0_i32_0 : i32, i32
  }
  func.func @transform_6(%arg0: i32) -> (i32, i32) {
    %c0_i32 = arith.constant 0 : i32
    %c0_i32_0 = arith.constant 0 : i32
    %c0_i32_1 = arith.constant 0 : i32
    return %c0_i32, %c0_i32_0 : i32, i32
  }
  func.func @transform_7(%arg0: i32) -> (i32, i32) {
    %c0_i32 = arith.constant 0 : i32
    %c0_i32_0 = arith.constant 0 : i32
    %c0_i32_1 = arith.constant 0 : i32
    return %c0_i32, %c0_i32_0 : i32, i32
  }
  func.func @transform_8(%arg0: i32) -> (i32, i32) {
    %c0_i32 = arith.constant 0 : i32
    %c0_i32_0 = arith.constant 0 : i32
    %c0_i32_1 = arith.constant 0 : i32
    return %c0_i32, %c0_i32_0 : i32, i32
  }
  func.func @transform_9(%arg0: i32) -> (i32, i32) {
    %c0_i32 = arith.constant 0 : i32
    %c0_i32_0 = arith.constant 0 : i32
    %c0_i32_1 = arith.constant 0 : i32
    return %c0_i32, %c0_i32_0 : i32, i32
  }
  func.func @transform_10(%arg0: i32) -> (i32, i32) {
    %c0_i32 = arith.constant 0 : i32
    %c0_i32_0 = arith.constant 0 : i32
    %c0_i32_1 = arith.constant 0 : i32
    return %c0_i32, %c0_i32_0 : i32, i32
  }
  func.func @transform_11(%arg0: i32) -> (i32, i32) {
    %c0_i32 = arith.constant 0 : i32
    %c0_i32_0 = arith.constant 0 : i32
    return %arg0, %c0_i32 : i32, i32
  }
}

</mosaic_0001>

<llo_original>
// kernel: tpu_custom_call.1
$region0: #{tpu_custom_call.1}
  #allocation0 [shape = 'u32[]', space=smem, size = 0x4, offset = 0x4, fixed_abs, tag = 'smem constant byte address 0x4 - core index']
  #allocation1 [shape = 'u32[72,128]{1,0:T(1,128)}', space=vmem, size = 0x9000, scoped, tag = 'internal scratch']
  %s0 = inlined_call_operand.vmem [shape: bf16[16,37], index: 0, kind: input, shape index: {}]
  %s1 = inlined_call_operand.vmem [shape: bf16[37,32], index: 1, kind: input, shape index: {}]
  %s2 = inlined_call_operand.hbm [shape: f32[1,32], index: 2, kind: input, shape index: {}]
  %s3 = inlined_call_operand.hbm [shape: bf16[32,64], index: 3, kind: input, shape index: {}]
  %s4 = inlined_call_operand.hbm [shape: f32[1,64], index: 4, kind: input, shape index: {}]
  %s5 = inlined_call_operand.vmem [shape: bf16[64,128], index: 5, kind: input, shape index: {}]
  %s6 = inlined_call_operand.hbm [shape: f32[1,128], index: 6, kind: input, shape index: {}]
  %s7 = inlined_call_operand.hbm [shape: bf16[128,256], index: 7, kind: input, shape index: {}]
  %s8 = inlined_call_operand.vmem [shape: f32[1,256], index: 8, kind: input, shape index: {}]
  %s9 = inlined_call_operand.hbm [shape: bf16[256,128], index: 9, kind: input, shape index: {}]
  %s10 = inlined_call_operand.vmem [shape: f32[1,128], index: 10, kind: input, shape index: {}]
  %s11 = inlined_call_operand.hbm [shape: f32[16,128], index: 11, kind: output, shape index: {}]
  %s12 = sld [smem:[#allocation0]]
  $region78: #{tpu_custom_call.1} parent=0
    _
  %s14 = ssub.s32 1, %s12
  %s15 = scalar_select 0, %s14, %s12
  $region1: #{tpu_custom_call.1} parent=0
    #allocation2 [shape = 'u8[512]{0}', space=vmem, size = 0x400, scoped, tag = 'input window, operand 2, single buffered']
    #allocation3 [shape = 's32[1]{0}', space=sflag, size = 0x4, scoped, tag = 'scoped memory for tpu_custom_call.1']
    #allocation4 [shape = 's32[1]{0}', space=sflag, size = 0x4, scoped, tag = 'scoped memory for tpu_custom_call.1']
    #allocation5 [shape = 'u8[8192]{0}', space=vmem, size = 0x2000, scoped, tag = 'input window, operand 3, single buffered']
    #allocation6 [shape = 's32[1]{0}', space=sflag, size = 0x4, scoped, tag = 'scoped memory for tpu_custom_call.1']
    #allocation7 [shape = 'u8[512]{0}', space=vmem, size = 0x400, scoped, tag = 'input window, operand 4, single buffered']
    #allocation8 [shape = 'u8[512]{0}', space=vmem, size = 0x400, scoped, tag = 'input window, operand 6, single buffered']
    #allocation9 [shape = 's32[1]{0}', space=sflag, size = 0x4, scoped, tag = 'scoped memory for tpu_custom_call.1']
    #allocation10 [shape = 'u8[65536]{0}', space=vmem, size = 0x10000, scoped, tag = 'input window, operand 7, single buffered']
    #allocation11 [shape = 'u8[65536]{0}', space=vmem, size = 0x10000, scoped, tag = 'input window, operand 9, single buffered']
    #allocation12 [shape = 's32[1]{0}', space=sflag, size = 0x4, scoped, tag = 'scoped memory for tpu_custom_call.1']
    #allocation13 [shape = 'u8[8192]{0}', space=vmem, size = 0x2000, scoped, tag = 'output window, operand 0, single buffered']
    %16 = vsyncpa [#allocation3], 0
    %17 = vsyncpa [#allocation6], 0
    %18 = vsyncpa [#allocation9], 0
    %19 = vsyncpa [#allocation12], 0
    %20 = vsyncpa [#allocation4], 0
    // Predicated region
    $region2: #{tpu_custom_call.1} parent=1 // pred_check
      _
    $region3: #{tpu_custom_call.1} parent=1 // pred_check_branch
      %22 = sbr.rel (0) target = $region5
    $region4: #{tpu_custom_call.1} parent=1 // pred_region
      _
    $region5: #{tpu_custom_call.1} parent=1 // pred_fallthru
      _
    // Predicated region
    $region6: #{tpu_custom_call.1} parent=1 // pred_check
      _
    $region7: #{tpu_custom_call.1} parent=1 // pred_check_branch
      %24 = sbr.rel (0) target = $region9
    $region8: #{tpu_custom_call.1} parent=1 // pred_region
      _
    $region9: #{tpu_custom_call.1} parent=1 // pred_fallthru
      _
    // Predicated region
    $region10: #{tpu_custom_call.1} parent=1 // pred_check
      _
    $region11: #{tpu_custom_call.1} parent=1 // pred_check_branch
      %26 = sbr.rel (0) target = $region13
    $region12: #{tpu_custom_call.1} parent=1 // pred_region
      %28 = vsyncadd [#allocation3], 0
      %s30 = sshll.u32 %s2, 4
      %s31 = int_to_ptr.hbm [resolvable:$true] %s30
      %s32 = sshll.u32 [#allocation2], 4
      %s33 = int_to_ptr.vmem [resolvable:$true] %s32
      %35 = dma.hbm_to_vmem [thread:$0]  %s31, 16, %s33, [#allocation3]
    $region13: #{tpu_custom_call.1} parent=1 // pred_fallthru
      _
    // Predicated region
    $region14: #{tpu_custom_call.1} parent=1 // pred_check
      _
    $region15: #{tpu_custom_call.1} parent=1 // pred_check_branch
      %37 = sbr.rel (0) target = $region17
    $region16: #{tpu_custom_call.1} parent=1 // pred_region
      %39 = vsyncadd [#allocation6], 0
      %s40 = sshll.u32 %s3, 4
      %s41 = int_to_ptr.hbm [resolvable:$true] %s40
      %s42 = sshll.u32 [#allocation5], 4
      %s43 = int_to_ptr.vmem [resolvable:$true] %s42
      %48 = dma.hbm_to_vmem [thread:$0]  %s41, 256, %s43, [#allocation6], 64, 64, 4
    $region17: #{tpu_custom_call.1} parent=1 // pred_fallthru
      _
    // Predicated region
    $region18: #{tpu_custom_call.1} parent=1 // pred_check
      _
    $region19: #{tpu_custom_call.1} parent=1 // pred_check_branch
      %50 = sbr.rel (0) target = $region21
    $region20: #{tpu_custom_call.1} parent=1 // pred_region
      %52 = vsyncadd [#allocation6], 0
      %s54 = sshll.u32 %s4, 4
      %s55 = int_to_ptr.hbm [resolvable:$true] %s54
      %s56 = sshll.u32 [#allocation7], 4
      %s57 = int_to_ptr.vmem [resolvable:$true] %s56
      %59 = dma.hbm_to_vmem [thread:$0]  %s55, 16, %s57, [#allocation6]
    $region21: #{tpu_custom_call.1} parent=1 // pred_fallthru
      _
    // Predicated region
    $region22: #{tpu_custom_call.1} parent=1 // pred_check
      _
    $region23: #{tpu_custom_call.1} parent=1 // pred_check_branch
      %61 = sbr.rel (0) target = $region25
    $region24: #{tpu_custom_call.1} parent=1 // pred_region
      _
    $region25: #{tpu_custom_call.1} parent=1 // pred_fallthru
      _
    // Predicated region
    $region26: #{tpu_custom_call.1} parent=1 // pred_check
      _
    $region27: #{tpu_custom_call.1} parent=1 // pred_check_branch
      %63 = sbr.rel (0) target = $region29
    $region28: #{tpu_custom_call.1} parent=1 // pred_region
      %65 = vsyncadd [#allocation9], 0
      %s67 = sshll.u32 %s6, 4
      %s68 = int_to_ptr.hbm [resolvable:$true] %s67
      %s69 = sshll.u32 [#allocation8], 4
      %s70 = int_to_ptr.vmem [resolvable:$true] %s69
      %72 = dma.hbm_to_vmem [thread:$0]  %s68, 16, %s70, [#allocation9]
    $region29: #{tpu_custom_call.1} parent=1 // pred_fallthru
      _
    // Predicated region
    $region30: #{tpu_custom_call.1} parent=1 // pred_check
      _
    $region31: #{tpu_custom_call.1} parent=1 // pred_check_branch
      %74 = sbr.rel (0) target = $region33
    $region32: #{tpu_custom_call.1} parent=1 // pred_region
      %76 = vsyncadd [#allocation9], 0
      %s77 = sshll.u32 %s7, 4
      %s78 = int_to_ptr.hbm [resolvable:$true] %s77
      %s79 = sshll.u32 [#allocation10], 4
      %s80 = int_to_ptr.vmem [resolvable:$true] %s79
      %85 = dma.hbm_to_vmem [thread:$0]  %s78, 2048, %s80, [#allocation9], 128, 128, 8
    $region33: #{tpu_custom_call.1} parent=1 // pred_fallthru
      _
    // Predicated region
    $region34: #{tpu_custom_call.1} parent=1 // pred_check
      _
    $region35: #{tpu_custom_call.1} parent=1 // pred_check_branch
      %87 = sbr.rel (0) target = $region37
    $region36: #{tpu_custom_call.1} parent=1 // pred_region
      _
    $region37: #{tpu_custom_call.1} parent=1 // pred_fallthru
      _
    // Predicated region
    $region38: #{tpu_custom_call.1} parent=1 // pred_check
      _
    $region39: #{tpu_custom_call.1} parent=1 // pred_check_branch
      %89 = sbr.rel (0) target = $region41
    $region40: #{tpu_custom_call.1} parent=1 // pred_region
      %91 = vsyncadd [#allocation12], 0
      %s92 = sshll.u32 %s9, 4
      %s93 = int_to_ptr.hbm [resolvable:$true] %s92
      %s94 = sshll.u32 [#allocation11], 4
      %s95 = int_to_ptr.vmem [resolvable:$true] %s94
      %100 = dma.hbm_to_vmem [thread:$0]  %s93, 2048, %s95, [#allocation12], 64, 64, 4
    $region41: #{tpu_custom_call.1} parent=1 // pred_fallthru
      _
    // Predicated region
    $region42: #{tpu_custom_call.1} parent=1 // pred_check
      _
    $region43: #{tpu_custom_call.1} parent=1 // pred_check_branch
      %102 = sbr.rel (0) target = $region45
    $region44: #{tpu_custom_call.1} parent=1 // pred_region
      _
    $region45: #{tpu_custom_call.1} parent=1 // pred_fallthru
      _
    // Predicated region
    $region46: #{tpu_custom_call.1} parent=1 // pred_check
      _
    $region47: #{tpu_custom_call.1} parent=1 // pred_check_branch
      %104 = sbr.rel (0) target = $region49
    $region48: #{tpu_custom_call.1} parent=1 // pred_region
      %106 = dma.done [#allocation3], 16
    $region49: #{tpu_custom_call.1} parent=1 // pred_fallthru
      _
    // Predicated region
    $region50: #{tpu_custom_call.1} parent=1 // pred_check
      _
    $region51: #{tpu_custom_call.1} parent=1 // pred_check_branch
      %108 = sbr.rel (0) target = $region53
    $region52: #{tpu_custom_call.1} parent=1 // pred_region
      %110 = dma.done [#allocation6], 256
    $region53: #{tpu_custom_call.1} parent=1 // pred_fallthru
      _
    // Predicated region
    $region54: #{tpu_custom_call.1} parent=1 // pred_check
      _
    $region55: #{tpu_custom_call.1} parent=1 // pred_check_branch
      %112 = sbr.rel (0) target = $region57
    $region56: #{tpu_custom_call.1} parent=1 // pred_region
      %114 = dma.done [#allocation6], 16
    $region57: #{tpu_custom_call.1} parent=1 // pred_fallthru
      _
    // Predicated region
    $region58: #{tpu_custom_call.1} parent=1 // pred_check
      _
    $region59: #{tpu_custom_call.1} parent=1 // pred_check_branch
      %116 = sbr.rel (0) target = $region61
    $region60: #{tpu_custom_call.1} parent=1 // pred_region
      %118 = dma.done [#allocation9], 16
    $region61: #{tpu_custom_call.1} parent=1 // pred_fallthru
      _
    // Predicated region
    $region62: #{tpu_custom_call.1} parent=1 // pred_check
      _
    $region63: #{tpu_custom_call.1} parent=1 // pred_check_branch
      %120 = sbr.rel (0) target = $region65
    $region64: #{tpu_custom_call.1} parent=1 // pred_region
      %122 = dma.done [#allocation9], 2048
    $region65: #{tpu_custom_call.1} parent=1 // pred_fallthru
      _
    // Predicated region
    $region66: #{tpu_custom_call.1} parent=1 // pred_check
      _
    $region67: #{tpu_custom_call.1} parent=1 // pred_check_branch
      %124 = sbr.rel (0) target = $region69
    $region68: #{tpu_custom_call.1} parent=1 // pred_region
      %126 = dma.done [#allocation12], 2048
    $region69: #{tpu_custom_call.1} parent=1 // pred_fallthru
      _
    %v128 = vld [vmem:[%s0] sm:$0xf]
    %v129 = vld [vmem:[%s0 + $0x4] sm:$0xf]
    %v130 = vld [vmem:[%s1] sm:$0xf]
    %v131 = vld [vmem:[%s1 + $0x4] sm:$0xf]
    %v132 = vld [vmem:[%s1 + $0x8] sm:$0xf]
    %v133 = vld [vmem:[%s1 + $0xc] sm:$0xf]
    %v134 = vld [vmem:[%s1 + $0x10] sm:$0x7]
    %v135 = vld [vmem:[#allocation2] sm:$0x1]
    %v137 = vperm.slane %v135, 0
    %v141 = vunpack.c.l.b16 %v128
    %v142 = vunpack.c.l.b16 %v129
    %v143 = vpack.c.b16 %v142, %v141
    %v149 = vunpack.c.l.b16 %v130
    %v150 = vunpack.c.l.b16 %v131
    %v151 = vunpack.c.l.b16 %v132
    %v152 = vunpack.c.l.b16 %v133
    %v153 = vunpack.c.l.b16 %v134
    %v154 = vpack.c.b16 %v150, %v149
    %v155 = vpack.c.b16 %v152, %v151
    %v156 = vpack.c.b16 %v153, %v153
    %vm159 = vcmask 302080
    %v161 = vsel %vm159, %v143, 0
    %vm163 = vcmask 1041408
    %vm164 = vcmask 1042432
    %v165 = vsel %vm163, 4294967295, 65535
    %v166 = vsel %vm164, %v165, 0
    %v168 = vand.u32 %v156, %v166
    %170 = vmatpush.bf16.msra.mxu0 0
    %171 = vmatpush.bf16.msra.mxu0 0
    %172 = vmatpush.bf16.msra.mxu0 0
    %173 = vmatpush.bf16.msra.mxu0 0
    %174 = vmatpush.bf16.msra.mxu0 0
    %175 = vmatpush.bf16.msra.mxu0 %v168
    %176 = vmatpush.bf16.msra.mxu0 %v155
    %177 = vmatpush.bf16.msra.mxu0 %v154
    %178 = vmatmul.bf16.gmra.mxu0 %v161
    %v179 = vpop.f32.mrf.mxu0
    %v180 = vadd.f32 %v137, %v179
    %v181 = vpop.f32.mrf.mxu0
    %v182 = vadd.f32 %v137, %v181
    %183 = vdwg.mxu0
    %v184 = vmax.f32 %v180, 0.0
    %v185 = vmax.f32 %v182, 0.0
    %v186 = vpack.c.bf16 %v185, %v184
    %v187 = vld [vmem:[#allocation5] sm:$0xf]
    %v188 = vld [vmem:[#allocation5 + $0x4] sm:$0xf]
    %v189 = vld [vmem:[#allocation5 + $0x8] sm:$0xf]
    %v190 = vld [vmem:[#allocation5 + $0xc] sm:$0xf]
    %v191 = vld [vmem:[#allocation7] sm:$0x1]
    %v193 = vperm.slane %v191, 0
    %v199 = vunpack.c.l.b16 %v187
    %v200 = vunpack.c.l.b16 %v188
    %v201 = vunpack.c.l.b16 %v189
    %v202 = vunpack.c.l.b16 %v190
    %v203 = vpack.c.b16 %v200, %v199
    %v204 = vpack.c.b16 %v202, %v201
    %vm207 = vcmask 261120
    %v209 = vsel %vm207, %v186, 0
    %211 = vmatpush.bf16.msra.mxu0 0
    %212 = vmatpush.bf16.msra.mxu0 0
    %213 = vmatpush.bf16.msra.mxu0 0
    %214 = vmatpush.bf16.msra.mxu0 0
    %215 = vmatpush.bf16.msra.mxu0 0
    %216 = vmatpush.bf16.msra.mxu0 0
    %217 = vmatpush.bf16.msra.mxu0 %v204
    %218 = vmatpush.bf16.msra.mxu0 %v203
    %219 = vmatmul.bf16.gmra.mxu0 %v209
    %v220 = vpop.f32.mrf.mxu0
    %v221 = vadd.f32 %v193, %v220
    %v222 = vpop.f32.mrf.mxu0
    %v223 = vadd.f32 %v193, %v222
    %224 = vdwg.mxu0
    %v225 = vmax.f32 %v221, 0.0
    %v226 = vmax.f32 %v223, 0.0
    %v227 = vpack.c.bf16 %v226, %v225
    %v228 = vld [vmem:[%s5] sm:$0xf]
    %v229 = vld [vmem:[%s5 + $0x4] sm:$0xf]
    %v230 = vld [vmem:[%s5 + $0x8] sm:$0xf]
    %v231 = vld [vmem:[%s5 + $0xc] sm:$0xf]
    %v232 = vld [vmem:[%s5 + $0x10] sm:$0xf]
    %v233 = vld [vmem:[%s5 + $0x14] sm:$0xf]
    %v234 = vld [vmem:[%s5 + $0x18] sm:$0xf]
    %v235 = vld [vmem:[%s5 + $0x1c] sm:$0xf]
    %v236 = vld [vmem:[#allocation8] sm:$0x1]
    %v238 = vperm.slane %v236, 0
    %v248 = vunpack.c.l.b16 %v228
    %v249 = vunpack.c.l.b16 %v229
    %v250 = vunpack.c.l.b16 %v230
    %v251 = vunpack.c.l.b16 %v231
    %v252 = vunpack.c.l.b16 %v232
    %v253 = vunpack.c.l.b16 %v233
    %v254 = vunpack.c.l.b16 %v234
    %v255 = vunpack.c.l.b16 %v235
    %v256 = vpack.c.b16 %v249, %v248
    %v257 = vpack.c.b16 %v251, %v250
    %v258 = vpack.c.b16 %v253, %v252
    %v259 = vpack.c.b16 %v255, %v254
    %vm264 = vcmask 523264
    %v266 = vsel %vm264, %v227, 0
    %268 = vmatpush.bf16.msra.mxu0 0
    %269 = vmatpush.bf16.msra.mxu0 0
    %270 = vmatpush.bf16.msra.mxu0 0
    %271 = vmatpush.bf16.msra.mxu0 0
    %272 = vmatpush.bf16.msra.mxu0 %v259
    %273 = vmatpush.bf16.msra.mxu0 %v258
    %274 = vmatpush.bf16.msra.mxu0 %v257
    %275 = vmatpush.bf16.msra.mxu0 %v256
    %276 = vmatmul.bf16.gmra.mxu0 %v266
    %v277 = vpop.f32.mrf.mxu0
    %v278 = vadd.f32 %v238, %v277
    %v279 = vpop.f32.mrf.mxu0
    %v280 = vadd.f32 %v238, %v279
    %281 = vdwg.mxu0
    %v282 = vmax.f32 %v278, 0.0
    %v283 = vmax.f32 %v280, 0.0
    %v284 = vpack.c.bf16 %v283, %v282
    %v285 = vld [vmem:[#allocation10] sm:$0xff]
    %v286 = vld [vmem:[#allocation10 + $0x8] sm:$0xff]
    %v287 = vld [vmem:[#allocation10 + $0x10] sm:$0xff]
    %v288 = vld [vmem:[#allocation10 + $0x18] sm:$0xff]
    %v289 = vld [vmem:[#allocation10 + $0x20] sm:$0xff]
    %v290 = vld [vmem:[#allocation10 + $0x28] sm:$0xff]
    %v291 = vld [vmem:[#allocation10 + $0x30] sm:$0xff]
    %v292 = vld [vmem:[#allocation10 + $0x38] sm:$0xff]
    %v293 = vld [vmem:[#allocation10 + $0x40] sm:$0xff]
    %v294 = vld [vmem:[#allocation10 + $0x48] sm:$0xff]
    %v295 = vld [vmem:[#allocation10 + $0x50] sm:$0xff]
    %v296 = vld [vmem:[#allocation10 + $0x58] sm:$0xff]
    %v297 = vld [vmem:[#allocation10 + $0x60] sm:$0xff]
    %v298 = vld [vmem:[#allocation10 + $0x68] sm:$0xff]
    %v299 = vld [vmem:[#allocation10 + $0x70] sm:$0xff]
    %v300 = vld [vmem:[#allocation10 + $0x78] sm:$0xff]
    %v301 = vld [vmem:[%s8] sm:$0x3]
    %v303 = vperm.slane %v301, 0
    %v304 = vperm.slane %v301, 1
    %v323 = vunpack.c.l.b16 %v285
    %v324 = vunpack.c.h.b16 %v285
    %v325 = vunpack.c.l.b16 %v286
    %v326 = vunpack.c.h.b16 %v286
    %v327 = vunpack.c.l.b16 %v287
    %v328 = vunpack.c.h.b16 %v287
    %v329 = vunpack.c.l.b16 %v288
    %v330 = vunpack.c.h.b16 %v288
    %v331 = vunpack.c.l.b16 %v289
    %v332 = vunpack.c.h.b16 %v289
    %v333 = vunpack.c.l.b16 %v290
    %v334 = vunpack.c.h.b16 %v290
    %v335 = vunpack.c.l.b16 %v291
    %v336 = vunpack.c.h.b16 %v291
    %v337 = vunpack.c.l.b16 %v292
    %v338 = vunpack.c.h.b16 %v292
    %v339 = vunpack.c.l.b16 %v293
    %v340 = vunpack.c.h.b16 %v293
    %v341 = vunpack.c.l.b16 %v294
    %v342 = vunpack.c.h.b16 %v294
    %v343 = vunpack.c.l.b16 %v295
    %v344 = vunpack.c.h.b16 %v295
    %v345 = vunpack.c.l.b16 %v296
    %v346 = vunpack.c.h.b16 %v296
    %v347 = vunpack.c.l.b16 %v297
    %v348 = vunpack.c.h.b16 %v297
    %v349 = vunpack.c.l.b16 %v298
    %v350 = vunpack.c.h.b16 %v298
    %v351 = vunpack.c.l.b16 %v299
    %v352 = vunpack.c.h.b16 %v299
    %v353 = vunpack.c.l.b16 %v300
    %v354 = vunpack.c.h.b16 %v300
    %v355 = vpack.c.b16 %v325, %v323
    %v356 = vpack.c.b16 %v326, %v324
    %v357 = vpack.c.b16 %v329, %v327
    %v358 = vpack.c.b16 %v330, %v328
    %v359 = vpack.c.b16 %v333, %v331
    %v360 = vpack.c.b16 %v334, %v332
    %v361 = vpack.c.b16 %v337, %v335
    %v362 = vpack.c.b16 %v338, %v336
    %v363 = vpack.c.b16 %v341, %v339
    %v364 = vpack.c.b16 %v342, %v340
    %v365 = vpack.c.b16 %v345, %v343
    %v366 = vpack.c.b16 %v346, %v344
    %v367 = vpack.c.b16 %v349, %v347
    %v368 = vpack.c.b16 %v350, %v348
    %v369 = vpack.c.b16 %v353, %v351
    %v370 = vpack.c.b16 %v354, %v352
    %387 = vmatpush.bf16.msra.mxu0 %v369
    %388 = vmatpush.bf16.msra.mxu0 %v367
    %389 = vmatpush.bf16.msra.mxu0 %v365
    %390 = vmatpush.bf16.msra.mxu0 %v363
    %391 = vmatpush.bf16.msra.mxu0 %v361
    %392 = vmatpush.bf16.msra.mxu0 %v359
    %393 = vmatpush.bf16.msra.mxu0 %v357
    %394 = vmatpush.bf16.msra.mxu0 %v355
    %395 = vmatmul.bf16.gmra.mxu0 %v284
    %v396 = vpop.f32.mrf.mxu0
    %v397 = vadd.f32 %v303, %v396
    %v398 = vpop.f32.mrf.mxu0
    %v399 = vadd.f32 %v303, %v398
    %400 = vdwg.mxu0
    %401 = vmatpush.bf16.msra.mxu0 %v370
    %402 = vmatpush.bf16.msra.mxu0 %v368
    %403 = vmatpush.bf16.msra.mxu0 %v366
    %404 = vmatpush.bf16.msra.mxu0 %v364
    %405 = vmatpush.bf16.msra.mxu0 %v362
    %406 = vmatpush.bf16.msra.mxu0 %v360
    %407 = vmatpush.bf16.msra.mxu0 %v358
    %408 = vmatpush.bf16.msra.mxu0 %v356
    %409 = vmatmul.bf16.gmra.mxu0 %v284
    %v410 = vpop.f32.mrf.mxu0
    %v411 = vadd.f32 %v304, %v410
    %v412 = vpop.f32.mrf.mxu0
    %v413 = vadd.f32 %v304, %v412
    %414 = vdwg.mxu0
    %v415 = vmax.f32 %v397, 0.0
    %v416 = vmax.f32 %v411, 0.0
    %v417 = vmax.f32 %v399, 0.0
    %v418 = vmax.f32 %v413, 0.0
    %v419 = vpack.c.bf16 %v417, %v415
    %v420 = vpack.c.bf16 %v418, %v416
    %v421 = vld [vmem:[#allocation11] sm:$0xf]
    %v422 = vld [vmem:[#allocation11 + $0x4] sm:$0xf]
    %v423 = vld [vmem:[#allocation11 + $0x8] sm:$0xf]
    %v424 = vld [vmem:[#allocation11 + $0xc] sm:$0xf]
    %v425 = vld [vmem:[#allocation11 + $0x10] sm:$0xf]
    %v426 = vld [vmem:[#allocation11 + $0x14] sm:$0xf]
    %v427 = vld [vmem:[#allocation11 + $0x18] sm:$0xf]
    %v428 = vld [vmem:[#allocation11 + $0x1c] sm:$0xf]
    %v429 = vld [vmem:[#allocation11 + $0x20] sm:$0xf]
    %v430 = vld [vmem:[#allocation11 + $0x24] sm:$0xf]
    %v431 = vld [vmem:[#allocation11 + $0x28] sm:$0xf]
    %v432 = vld [vmem:[#allocation11 + $0x2c] sm:$0xf]
    %v433 = vld [vmem:[#allocation11 + $0x30] sm:$0xf]
    %v434 = vld [vmem:[#allocation11 + $0x34] sm:$0xf]
    %v435 = vld [vmem:[#allocation11 + $0x38] sm:$0xf]
    %v436 = vld [vmem:[#allocation11 + $0x3c] sm:$0xf]
    %v437 = vld [vmem:[#allocation11 + $0x40] sm:$0xf]
    %v438 = vld [vmem:[#allocation11 + $0x44] sm:$0xf]
    %v439 = vld [vmem:[#allocation11 + $0x48] sm:$0xf]
    %v440 = vld [vmem:[#allocation11 + $0x4c] sm:$0xf]
    %v441 = vld [vmem:[#allocation11 + $0x50] sm:$0xf]
    %v442 = vld [vmem:[#allocation11 + $0x54] sm:$0xf]
    %v443 = vld [vmem:[#allocation11 + $0x58] sm:$0xf]
    %v444 = vld [vmem:[#allocation11 + $0x5c] sm:$0xf]
    %v445 = vld [vmem:[#allocation11 + $0x60] sm:$0xf]
    %v446 = vld [vmem:[#allocation11 + $0x64] sm:$0xf]
    %v447 = vld [vmem:[#allocation11 + $0x68] sm:$0xf]
    %v448 = vld [vmem:[#allocation11 + $0x6c] sm:$0xf]
    %v449 = vld [vmem:[#allocation11 + $0x70] sm:$0xf]
    %v450 = vld [vmem:[#allocation11 + $0x74] sm:$0xf]
    %v451 = vld [vmem:[#allocation11 + $0x78] sm:$0xf]
    %v452 = vld [vmem:[#allocation11 + $0x7c] sm:$0xf]
    %v453 = vld [vmem:[%s10] sm:$0x1]
    %v455 = vperm.slane %v453, 0
    %v489 = vunpack.c.l.b16 %v421
    %v490 = vunpack.c.l.b16 %v422
    %v491 = vunpack.c.l.b16 %v423
    %v492 = vunpack.c.l.b16 %v424
    %v493 = vunpack.c.l.b16 %v425
    %v494 = vunpack.c.l.b16 %v426
    %v495 = vunpack.c.l.b16 %v427
    %v496 = vunpack.c.l.b16 %v428
    %v497 = vunpack.c.l.b16 %v429
    %v498 = vunpack.c.l.b16 %v430
    %v499 = vunpack.c.l.b16 %v431
    %v500 = vunpack.c.l.b16 %v432
    %v501 = vunpack.c.l.b16 %v433
    %v502 = vunpack.c.l.b16 %v434
    %v503 = vunpack.c.l.b16 %v435
    %v504 = vunpack.c.l.b16 %v436
    %v505 = vunpack.c.l.b16 %v437
    %v506 = vunpack.c.l.b16 %v438
    %v507 = vunpack.c.l.b16 %v439
    %v508 = vunpack.c.l.b16 %v440
    %v509 = vunpack.c.l.b16 %v441
    %v510 = vunpack.c.l.b16 %v442
    %v511 = vunpack.c.l.b16 %v443
    %v512 = vunpack.c.l.b16 %v444
    %v513 = vunpack.c.l.b16 %v445
    %v514 = vunpack.c.l.b16 %v446
    %v515 = vunpack.c.l.b16 %v447
    %v516 = vunpack.c.l.b16 %v448
    %v517 = vunpack.c.l.b16 %v449
    %v518 = vunpack.c.l.b16 %v450
    %v519 = vunpack.c.l.b16 %v451
    %v520 = vunpack.c.l.b16 %v452
    %v521 = vpack.c.b16 %v490, %v489
    %v522 = vpack.c.b16 %v492, %v491
    %v523 = vpack.c.b16 %v494, %v493
    %v524 = vpack.c.b16 %v496, %v495
    %v525 = vpack.c.b16 %v498, %v497
    %v526 = vpack.c.b16 %v500, %v499
    %v527 = vpack.c.b16 %v502, %v501
    %v528 = vpack.c.b16 %v504, %v503
    %v529 = vpack.c.b16 %v506, %v505
    %v530 = vpack.c.b16 %v508, %v507
    %v531 = vpack.c.b16 %v510, %v509
    %v532 = vpack.c.b16 %v512, %v511
    %v533 = vpack.c.b16 %v514, %v513
    %v534 = vpack.c.b16 %v516, %v515
    %v535 = vpack.c.b16 %v518, %v517
    %v536 = vpack.c.b16 %v520, %v519
    %553 = vmatpush.bf16.msra.mxu0 %v528
    %554 = vmatpush.bf16.msra.mxu0 %v527
    %555 = vmatpush.bf16.msra.mxu0 %v526
    %556 = vmatpush.bf16.msra.mxu0 %v525
    %557 = vmatpush.bf16.msra.mxu0 %v524
    %558 = vmatpush.bf16.msra.mxu0 %v523
    %559 = vmatpush.bf16.msra.mxu0 %v522
    %560 = vmatpush.bf16.msra.mxu0 %v521
    %561 = vmatmul.bf16.gmra.mxu0 %v419
    %v562 = vpop.f32.mrf.mxu0
    %v563 = vadd.f32 %v455, %v562
    %v564 = vpop.f32.mrf.mxu0
    %v565 = vadd.f32 %v455, %v564
    %566 = vdwg.mxu0
    %567 = vmatpush.bf16.msra.mxu0 %v536
    %568 = vmatpush.bf16.msra.mxu0 %v535
    %569 = vmatpush.bf16.msra.mxu0 %v534
    %570 = vmatpush.bf16.msra.mxu0 %v533
    %571 = vmatpush.bf16.msra.mxu0 %v532
    %572 = vmatpush.bf16.msra.mxu0 %v531
    %573 = vmatpush.bf16.msra.mxu0 %v530
    %574 = vmatpush.bf16.msra.mxu0 %v529
    %575 = vmatmul.bf16.gmra.mxu0 %v420
    %v576 = vpop.f32.mrf.mxu0
    %v577 = vadd.f32 %v563, %v576
    %v578 = vpop.f32.mrf.mxu0
    %v579 = vadd.f32 %v565, %v578
    %580 = vdwg.mxu0
    %581 = vst [vmem:[#allocation13] sm:$0xff] %v577
    %582 = vst [vmem:[#allocation13 + $0x8] sm:$0xff] %v579
    // Predicated region
    $region70: #{tpu_custom_call.1} parent=1 // pred_check
      _
    $region71: #{tpu_custom_call.1} parent=1 // pred_check_branch
      %584 = sbr.rel (0) target = $region73
    $region72: #{tpu_custom_call.1} parent=1 // pred_region
      %586 = vsyncadd [#allocation4], 0
      %s587 = sshll.u32 [#allocation13], 4
      %s588 = int_to_ptr.vmem [resolvable:$true] %s587
      %s589 = sshll.u32 %s11, 4
      %s590 = int_to_ptr.hbm [resolvable:$true] %s589
      %595 = dma.vmem_to_hbm [thread:$0]  %s588, 256, %s590, [#allocation4], 128, 128, 8
    $region73: #{tpu_custom_call.1} parent=1 // pred_fallthru
      _
    // Predicated region
    $region74: #{tpu_custom_call.1} parent=1 // pred_check
      _
    $region75: #{tpu_custom_call.1} parent=1 // pred_check_branch
      %597 = sbr.rel (0) target = $region77
    $region76: #{tpu_custom_call.1} parent=1 // pred_region
      %599 = dma.done [#allocation4], 256
    $region77: #{tpu_custom_call.1} parent=1 // pred_fallthru
      _
    %600 = vsyncpa [#allocation3], 1
    %601 = vsyncpa [#allocation6], 1
    %602 = vsyncpa [#allocation9], 1
    %603 = vsyncpa [#allocation12], 1
    %604 = vsyncpa [#allocation4], 1

</llo_original>
